<compile_context>
chip_gen: v7x
topology: tpu7x:2x2x1
jax: 0.10.0
libtpu: 0.0.40
codegen_flags: <defaults>
</compile_context>

<pallas_src>
import functools
import math

import jax
import jax.numpy as jnp
import numpy as np
from jax.experimental import pallas as pl
from jax.experimental.pallas import tpu as pltpu

_LANE = 128
_SUBLANE = {4: 8, 2: 16, 1: 32}  # sublane packing per itemsize (f32 / bf16 / int8)


# ----------------------------------------------------------------------------- kernel
def _pe_add_kernel(x_ref, pe_ref, o_ref):
    # x_ref / o_ref: (BN, C, TILE_L) VMEM tiles; pe_ref: (C, TILE_L).
    # Pure elementwise add; the batch broadcast is the trailing-dims numpy
    # broadcast plus the grid structure (pe block index ignores the batch axis).
    o_ref[...] = x_ref[...] + pe_ref[...]


# --------------------------------------------------------------- cached encoding (host)
@functools.lru_cache(maxsize=None)
def _cached_encoding_2d(orig_channels, X, Y, Z, dtype_name):
    """Mirror of PositionalEncoding3d.create_cached_encoding, flattened to (C, X*Y*Z).

    Built once per (C, X, Y, Z, dtype) on the host (like the module's cached buffer)
    so the forward pass never re-materializes it.
    """
    ch = math.ceil(orig_channels / 6) * 2
    if ch % 2:
        ch += 1
    inv_freq = 1.0 / (10000.0 ** (np.arange(0, ch, 2, dtype=np.float32) / ch))

    def emb_1d(npos):
        # torch get_emb: stack((sin, cos), dim=0).flatten(0, 1) == concat([sin, cos], 0)
        sin_inp = inv_freq[:, None] * np.arange(npos, dtype=np.float32)[None, :]
        return np.concatenate([np.sin(sin_inp), np.cos(sin_inp)], axis=0)  # (ch, npos)

    emb = np.zeros((3 * ch, X, Y, Z), dtype=np.float32)
    emb[:ch] = emb_1d(X)[:, :, None, None]
    emb[ch:2 * ch] = emb_1d(Y)[:, None, :, None]
    emb[2 * ch:] = emb_1d(Z)[:, None, None, :]
    pe = emb[:orig_channels].reshape(orig_channels, X * Y * Z)
    # Module stores cached_encoding at the input dtype and adds at that dtype.
    return jnp.asarray(pe).astype(dtype_name)


# ----------------------------------------------------------------------- tiling helpers
def _vmem_limit_bytes():
    """Explicit scoped-VMEM limit derived from the detected per-core capacity."""
    cap = 64 * 1024 * 1024  # conservative fallback = v7x per-TC VMEM
    try:
        cap = int(pltpu.get_tpu_info().vmem_capacity_bytes)
    except Exception:
        pass
    # Use half of physical VMEM: 64 MiB on v5e/v6e (128 MiB phys), 32 MiB on v7x.
    return max(32 * 1024 * 1024, min(cap // 2, 96 * 1024 * 1024))


def _choose_tiles(n, c, L, itemsize, per_buf_bytes, tile_l=None):
    """Pick (tile_l, num_l, bn, num_b) with sublane-padded VMEM accounting."""
    sub = _SUBLANE.get(itemsize, 8)
    padded_c = -(-c // sub) * sub          # sublane-padded channel rows per tile
    lane_cost = padded_c * itemsize        # real bytes per lane column

    if tile_l is None:
        if L <= _LANE:
            tile_l = L                     # full-extent last dim (allowed < 128)
        else:
            max_lanes = max(_LANE, (per_buf_bytes // lane_cost) // _LANE * _LANE)
            # Lane-dense 128-multiple tile <= L; cdiv grid masks the ragged edge.
            tile_l = int(min(max_lanes, (L // _LANE) * _LANE))
    num_l = pl.cdiv(L, tile_l)

    bn = 1
    if num_l == 1 and n > 1:
        # Single L tile: pack several batch elements per step to amortize the
        # per-step overhead, but keep >= ~4 batch steps so megacore / the
        # double-buffered pipeline still have work.
        bn_budget = max(1, per_buf_bytes // (lane_cost * tile_l))
        bn_steps = n // 4 if n >= 4 else 1
        bn = int(max(1, min(bn_budget, bn_steps)))
        while n % bn:                      # keep the batch grid exact (no ragged rows)
            bn -= 1
    num_b = pl.cdiv(n, bn)
    return tile_l, num_l, bn, num_b


# ---------------------------------------------------------------------------- wrapper
def positional_encoding_3d(x, *, tile_l=None, donate_x=False):
    """x: (N, C, X, Y, Z).  Returns x + positional encoding (broadcast over N)."""
    if x.ndim != 5:
        raise RuntimeError("The input tensor has to be 5D")
    n, c, X, Y, Z = x.shape
    L = X * Y * Z

    dtype = np.dtype(x.dtype)
    pe2 = _cached_encoding_2d(c, X, Y, Z, dtype.name)   # (C, L), cached across calls
    x3 = x.reshape(n, c, L)                             # free contiguous reshape

    vmem_limit = _vmem_limit_bytes()
    per_buf = vmem_limit // 8   # x/pe/out each double-buffered => 6 live tiles + headroom
    tile_l, num_l, bn, num_b = _choose_tiles(n, c, L, dtype.itemsize, per_buf, tile_l)

    out3 = pl.pallas_call(
        _pe_add_kernel,
        out_shape=jax.ShapeDtypeStruct((n, c, L), x.dtype),
        grid_spec=pltpu.PrefetchScalarGridSpec(
            num_scalar_prefetch=0,
            # Batch innermost => pe block index is constant across the inner loop,
            # so the PE tile is DMA'd once per L tile and stays VMEM-resident.
            grid=(num_l, num_b),
            in_specs=[
                pl.BlockSpec((bn, c, tile_l), lambda l, b: (b, 0, l)),
                pl.BlockSpec((c, tile_l), lambda l, b: (0, l)),
            ],
            out_specs=pl.BlockSpec((bn, c, tile_l), lambda l, b: (b, 0, l)),
        ),
        compiler_params=pltpu.CompilerParams(
            # No accumulation anywhere: both axes are safe to shard across
            # TensorCores (keeps the second v7x core busy even when num_l == 1).
            dimension_semantics=("parallel", "parallel"),
            vmem_limit_bytes=vmem_limit,
        ),
        input_output_aliases={0: 0} if donate_x else {},
    )(x3, pe2)

    return out3.reshape(n, c, X, Y, Z)


# -------------------------------------------------------------------- reference (numpy)
def _reference(x_np):
    """Independent per-channel numpy reimplementation of the torch forward."""
    n, c, X, Y, Z = x_np.shape
    ch = math.ceil(c / 6) * 2
    if ch % 2:
        ch += 1
    half = ch // 2
    inv_freq = 1.0 / (10000.0 ** (np.arange(0, ch, 2, dtype=np.float32) / ch))
    pe = np.zeros((c, X, Y, Z), dtype=np.float32)
    for ci in range(c):
        axis = ci // ch                 # 0 -> x, 1 -> y, 2 -> z
        within = ci % ch
        freq = inv_freq[within % half]
        trig = np.sin if within < half else np.cos
        size = (X, Y, Z)[axis]
        vec = trig(freq * np.arange(size, dtype=np.float32))
        shape = [1, 1, 1]
        shape[axis] = size
        pe[ci] = np.broadcast_to(vec.reshape(shape), (X, Y, Z))
    return x_np.astype(np.float32) + pe[None]


if __name__ == "__main__":
    key = jax.random.PRNGKey(0)
    k1, k2, k3 = jax.random.split(key, 3)

    # Typical module shape: (batch, channels, X, Y, Z) with L = X*Y*Z = 2048.
    N, C, D, H, W = 2, 4, 8, 16, 16
    x = jax.random.normal(k1, (N, C, D, H, W), dtype=jnp.float32)

    out_auto = jax.block_until_ready(positional_encoding_3d(x))              # single L tile
    out_512 = jax.block_until_ready(positional_encoding_3d(x, tile_l=512))   # multi L tile
    out_768 = jax.block_until_ready(positional_encoding_3d(x, tile_l=768))   # ragged edge

    ref = _reference(np.asarray(x))
    assert out_auto.shape == (N, C, D, H, W)
    np.testing.assert_allclose(np.asarray(out_auto), ref, atol=1e-5, rtol=1e-5)
    np.testing.assert_allclose(np.asarray(out_512), ref, atol=1e-5, rtol=1e-5)
    np.testing.assert_allclose(np.asarray(out_768), ref, atol=1e-5, rtol=1e-5)

    # L not a multiple of 128 -> 128-lane tiles + masked ragged last block (cdiv grid).
    xr = jax.random.normal(k2, (2, 4, 5, 6, 7), dtype=jnp.float32)           # L = 210
    out_r = jax.block_until_ready(positional_encoding_3d(xr))
    np.testing.assert_allclose(np.asarray(out_r), _reference(np.asarray(xr)),
                               atol=1e-5, rtol=1e-5)

    # Small volume, larger batch -> single L tile with bn > 1 batch blocking.
    xb = jax.random.normal(k3, (8, 4, 4, 4, 8), dtype=jnp.float32)           # L = 128
    out_b = jax.block_until_ready(positional_encoding_3d(xb))
    np.testing.assert_allclose(np.asarray(out_b), _reference(np.asarray(xb)),
                               atol=1e-5, rtol=1e-5)

    print("KERNEL_OK")
</pallas_src>

<mosaic_0001>
module attributes {stable_mosaic.version = 11 : i64} {
  func.func @_pe_add_kernel(%arg0: i32, %arg1: i32, %arg2: memref<1x4x2048xf32, #tpu.memory_space<vmem>>, %arg3: memref<4x2048xf32, #tpu.memory_space<vmem>>, %arg4: memref<1x4x2048xf32, #tpu.memory_space<vmem>>) attributes {dimension_semantics = [#tpu.dimension_semantics<parallel>, #tpu.dimension_semantics<parallel>], iteration_bounds = array<i64: 1, 2>, scalar_prefetch = 0 : i64, scratch_operands = 0 : i64, tpu.core_type = #tpu.core_type<tc>, window_params = [{transform_indices = @transform_0, window_bounds = array<i64: 1, 4, 2048>}, {transform_indices = @transform_1, window_bounds = array<i64: 4, 2048>}, {transform_indices = @transform_2, window_bounds = array<i64: 1, 4, 2048>}]} {
    %c0 = arith.constant 0 : index
    %c0_0 = arith.constant 0 : index
    %c0_1 = arith.constant 0 : index
    %0 = vector.load %arg2[%c0, %c0_0, %c0_1] : memref<1x4x2048xf32, #tpu.memory_space<vmem>>, vector<1x4x2048xf32>
    %c0_2 = arith.constant 0 : index
    %c0_3 = arith.constant 0 : index
    %1 = vector.load %arg3[%c0_2, %c0_3] : memref<4x2048xf32, #tpu.memory_space<vmem>>, vector<4x2048xf32>
    %2 = vector.shape_cast %1 : vector<4x2048xf32> to vector<1x4x2048xf32>
    %3 = arith.addf %0, %2 : vector<1x4x2048xf32>
    %c0_4 = arith.constant 0 : index
    %c0_5 = arith.constant 0 : index
    %c0_6 = arith.constant 0 : index
    %4 = vector.load %arg4[%c0_4, %c0_5, %c0_6] : memref<1x4x2048xf32, #tpu.memory_space<vmem>>, vector<1x4x2048xf32>
    tpu.vector_store %arg4[%c0_4, %c0_5, %c0_6], %3 {strides = array<i32>} : memref<1x4x2048xf32, #tpu.memory_space<vmem>>, vector<1x4x2048xf32>,
    return
  }
  func.func @transform_0(%arg0: i32, %arg1: i32) -> (i32, i32, i32) {
    %c0_i32 = arith.constant 0 : i32
    %c0_i32_0 = arith.constant 0 : i32
    return %arg1, %c0_i32, %arg0 : i32, i32, i32
  }
  func.func @transform_1(%arg0: i32, %arg1: i32) -> (i32, i32) {
    %c0_i32 = arith.constant 0 : i32
    %c0_i32_0 = arith.constant 0 : i32
    return %c0_i32, %arg0 : i32, i32
  }
  func.func @transform_2(%arg0: i32, %arg1: i32) -> (i32, i32, i32) {
    %c0_i32 = arith.constant 0 : i32
    %c0_i32_0 = arith.constant 0 : i32
    return %arg1, %c0_i32, %arg0 : i32, i32, i32
  }
}

</mosaic_0001>

<llo_original>
// kernel: tpu_custom_call.1
$region0: #{tpu_custom_call.1}
  #allocation0 [shape = 'u32[]', space=smem, size = 0x4, offset = 0x4, fixed_abs, tag = 'smem constant byte address 0x4 - core index']
  #allocation1 [shape = 'u32[144,128]{1,0:T(1,128)}', space=vmem, size = 0x12000, scoped, tag = 'internal scratch']
  %s0 = inlined_call_operand.hbm [shape: f32[2,4,2048], index: 0, kind: input, shape index: {}]
  %s1 = inlined_call_operand.hbm [shape: f32[4,2048], index: 1, kind: input, shape index: {}]
  %s2 = inlined_call_operand.hbm [shape: f32[2,4,2048], index: 2, kind: output, shape index: {}]
  %s3 = sld [smem:[#allocation0]]
  $region49: #{tpu_custom_call.1} parent=0
    _
  %s5 = ssub.s32 1, %s3
  %s6 = scalar_select 0, %s5, %s3
  $region1: #{tpu_custom_call.1} parent=0
    #allocation2 [shape = 'u8[65536]{0}', space=vmem, size = 0x10000, scoped, tag = 'input window, operand 0']
    #allocation3 [shape = 's32[2]{0}', space=sflag, size = 0x8, scoped, tag = 'scoped memory for tpu_custom_call.1']
    #allocation4 [shape = 's32[2]{0}', space=sflag, size = 0x8, scoped, tag = 'scoped memory for tpu_custom_call.1']
    #allocation5 [shape = 'u8[32768]{0}', space=vmem, size = 0x8000, scoped, tag = 'input window, operand 1, single buffered']
    #allocation6 [shape = 's32[1]{0}', space=sflag, size = 0x4, scoped, tag = 'scoped memory for tpu_custom_call.1']
    #allocation7 [shape = 'u8[65536]{0}', space=vmem, size = 0x10000, scoped, tag = 'output window, operand 0']
    %7 = vsyncpa [#allocation3], 0
    %s8 = scalar_lea.sflag [#allocation3], 1
    %9 = vsyncpa %s8, 0
    %10 = vsyncpa [#allocation6], 0
    %11 = vsyncpa [#allocation4], 0
    %s12 = scalar_lea.sflag [#allocation4], 1
    %13 = vsyncpa %s12, 0
    loop: start=0, step=1, limit=4
    $region2: #{tpu_custom_call.1} parent=1 // loop_pre_header
      _
    $region3: #{tpu_custom_call.1} parent=1 // loop_header
      %s15 = sphi 0, %s19
      %p16 = scmp.ge.s32.totalorder %s15, 4
      %s22 = sphi 0, %s34
      %s23 = sphi 0, %s30
      %s24 = sphi 0, %s22
      %s25 = sphi 0, %s23
      %s26 = sphi 0, %s24
      %s27 = sphi 0, %s25
      %s39 = sphi 0, %s41
      %s42 = sphi 0, %s39
      %s43 = sphi 0, %s42
      %s59 = sphi 0, %s43
      %s65 = sphi 0, %s67
      %s68 = sphi 0, %s65
      %s69 = sphi 0, %s68
      %s85 = sphi 0, %s69
      %s93 = sphi 0, %s95
      %s96 = sphi 0, %s93
      %s97 = sphi 0, %s96
      %s113 = sphi 0, %s97
    $region4: #{tpu_custom_call.1} parent=1 // loop_header_branch
      %18 = sbr.rel (%p16) target = $region8
    $region5: #{tpu_custom_call.1} parent=1 // loop_body
      %s20 = ssub.s32 %s15, 1
      %s21 = ssub.s32 %s15, 2
      %s28 = sadd.s32 1, %s23
      %p29 = scmp.ge.s32.totalorder %s28, 2
      %s30 = scalar_select %p29, 0, %s28
      %s31 = sadd.s32 1, %s22
      %s32 = scalar_select %p29, %s31, %s22
      %p33 = scmp.ge.s32.totalorder %s32, 1
      %s34 = scalar_select %p33, 0, %s32
      %s35 = ssub.s32 %s23, %s30
      %s36 = ssub.s32 %s22, %s34
      %s37 = sor.u32 %s35, %s36
      %p38 = scmp.eq.s32.totalorder %s37, 0
      %s40 = sadd.s32 %s39, 1
      %s41 = scalar_select %p38, %s39, %s40
      %p44 = pneg %p38
      %p45 = scmp.eq.s32.totalorder %s15, 1
      %p46 = por %p44, %p45
      %p47 = scmp.ne.s32.totalorder %s39, %s42
      %p48 = scmp.eq.s32.totalorder %s15, 0
      %p49 = por %p47, %p48
      %p50 = scmp.ne.s32.totalorder %s39, %s42
      %p51 = scmp.eq.s32.totalorder %s20, 1
      %p52 = por %p50, %p51
      %p53 = scmp.ne.s32.totalorder %s42, %s43
      %p54 = scmp.eq.s32.totalorder %s20, 0
      %p55 = por %p53, %p54
      %p56 = scmp.ne.s32.totalorder %s42, %s43
      %p57 = scmp.eq.s32.totalorder %s21, 1
      %p58 = por %p56, %p57
      %p60 = scmp.ne.s32.totalorder %s43, %s59
      %p61 = scmp.eq.s32.totalorder %s21, 0
      %p62 = por %p60, %p61
      %s63 = ssub.s32 %s22, %s34
      %p64 = scmp.eq.s32.totalorder %s63, 0
      %s66 = sadd.s32 %s65, 1
      %s67 = scalar_select %p64, %s65, %s66
      %p70 = pneg %p64
      %p71 = scmp.eq.s32.totalorder %s15, 1
      %p72 = por %p70, %p71
      %p73 = scmp.ne.s32.totalorder %s65, %s68
      %p74 = scmp.eq.s32.totalorder %s15, 0
      %p75 = por %p73, %p74
      %p76 = scmp.ne.s32.totalorder %s65, %s68
      %p77 = scmp.eq.s32.totalorder %s20, 1
      %p78 = por %p76, %p77
      %p79 = scmp.ne.s32.totalorder %s68, %s69
      %p80 = scmp.eq.s32.totalorder %s20, 0
      %p81 = por %p79, %p80
      %p82 = scmp.ne.s32.totalorder %s68, %s69
      %p83 = scmp.eq.s32.totalorder %s21, 1
      %p84 = por %p82, %p83
      %p86 = scmp.ne.s32.totalorder %s69, %s85
      %p87 = scmp.eq.s32.totalorder %s21, 0
      %p88 = por %p86, %p87
      %s89 = ssub.s32 %s23, %s30
      %s90 = ssub.s32 %s22, %s34
      %s91 = sor.u32 %s89, %s90
      %p92 = scmp.eq.s32.totalorder %s91, 0
      %s94 = sadd.s32 %s93, 1
      %s95 = scalar_select %p92, %s93, %s94
      %p98 = pneg %p92
      %p99 = scmp.eq.s32.totalorder %s15, 1
      %p100 = por %p98, %p99
      %p101 = scmp.ne.s32.totalorder %s93, %s96
      %p102 = scmp.eq.s32.totalorder %s15, 0
      %p103 = por %p101, %p102
      %p104 = scmp.ne.s32.totalorder %s93, %s96
      %p105 = scmp.eq.s32.totalorder %s20, 1
      %p106 = por %p104, %p105
      %p107 = scmp.ne.s32.totalorder %s96, %s97
      %p108 = scmp.eq.s32.totalorder %s20, 0
      %p109 = por %p107, %p108
      %p110 = scmp.ne.s32.totalorder %s96, %s97
      %p111 = scmp.eq.s32.totalorder %s21, 1
      %p112 = por %p110, %p111
      %p114 = scmp.ne.s32.totalorder %s97, %s113
      %p115 = scmp.eq.s32.totalorder %s21, 0
      %p116 = por %p114, %p115
      %p117 = scmp.le.s32.totalorder 1, %s15
      %p118 = scmp.lt.s32.totalorder %s15, 3
      %p119 = pnand %p117, %p118
      %p120 = pneg %p119
      // Predicated region
      $region9: #{tpu_custom_call.1} parent=5 // pred_check
        _
      $region10: #{tpu_custom_call.1} parent=5 // pred_check_branch
        %122 = sbr.rel (%p119) target = $region12
      $region11: #{tpu_custom_call.1} parent=5 // pred_region
        %s123 = ssub.s32 %s15, 1
        // Predicated region
        $region13: #{tpu_custom_call.1} parent=11 // pred_check
          %p124 = pneg %p81
        $region14: #{tpu_custom_call.1} parent=11 // pred_check_branch
          %126 = sbr.rel (%p124) target = $region16
        $region15: #{tpu_custom_call.1} parent=11 // pred_region
          %s127 = smul.u32 16, %s24
          %s129 = ssub.s32 1024, 1024
          %130 = vsyncadd [#allocation6], %s129
          %s131 = smul.addr %s127, 64
          %s132 = scalar_lea.hbm %s1, %s131
          %s134 = sshll.u32 [#allocation5], 4
          %s135 = int_to_ptr.vmem [resolvable:$true] %s134
          %137 = dma.hbm_to_vmem [thread:$0]  %s132, 1024, %s135, [#allocation6]
        $region16: #{tpu_custom_call.1} parent=11 // pred_fallthru
          _
      $region12: #{tpu_custom_call.1} parent=5 // pred_fallthru
        _
      %p138 = scmp.lt.s32.totalorder %s15, 2
      // Predicated region
      $region17: #{tpu_custom_call.1} parent=5 // pred_check
        %p139 = pneg %p138
      $region18: #{tpu_custom_call.1} parent=5 // pred_check_branch
        %141 = sbr.rel (%p139) target = $region20
      $region19: #{tpu_custom_call.1} parent=5 // pred_region
        // Predicated region
        $region21: #{tpu_custom_call.1} parent=19 // pred_check
          %p142 = pneg %p49
        $region22: #{tpu_custom_call.1} parent=19 // pred_check_branch
          %144 = sbr.rel (%p142) target = $region24
        $region23: #{tpu_custom_call.1} parent=19 // pred_region
          %s145 = sand.u32 %s39, 1
          %s146 = scalar_lea.sflag [#allocation3], %s145
          %s147 = sand.u32 %s39, 1
          %s148 = smul.addr %s147, 64
          %s149 = scalar_lea.vmem [#allocation2], %s148
          %s150 = smul.u32 16, %s22
          %s152 = ssub.s32 1024, 1024
          %153 = vsyncadd %s146, %s152
          %s154 = smul.addr %s23, 16
          %s155 = sadd.s32 %s150, %s154
          %s156 = smul.addr %s155, 64
          %s157 = scalar_lea.hbm %s0, %s156
          %s159 = sshll.u32 %s149, 4
          %s160 = int_to_ptr.vmem [resolvable:$true] %s159
          %162 = dma.hbm_to_vmem [thread:$0]  %s157, 1024, %s160, %s146
        $region24: #{tpu_custom_call.1} parent=19 // pred_fallthru
          _
      $region20: #{tpu_custom_call.1} parent=5 // pred_fallthru
        _
      %p163 = scmp.le.s32.totalorder 1, %s15
      %p164 = scmp.lt.s32.totalorder %s15, 3
      %p165 = pnand %p163, %p164
      %p166 = pneg %p165
      // Predicated region
      $region25: #{tpu_custom_call.1} parent=5 // pred_check
        _
      $region26: #{tpu_custom_call.1} parent=5 // pred_check_branch
        %168 = sbr.rel (%p165) target = $region28
      $region27: #{tpu_custom_call.1} parent=5 // pred_region
        %s169 = ssub.s32 %s15, 1
        %s170 = sand.u32 %s42, 1
        %s171 = scalar_lea.sflag [#allocation3], %s170
        %s172 = sand.u32 %s42, 1
        %s173 = smul.addr %s172, 64
        %s174 = scalar_lea.vmem [#allocation2], %s173
        // Predicated region
        $region29: #{tpu_custom_call.1} parent=27 // pred_check
          %p175 = pneg %p55
        $region30: #{tpu_custom_call.1} parent=27 // pred_check_branch
          %177 = sbr.rel (%p175) target = $region32
        $region31: #{tpu_custom_call.1} parent=27 // pred_region
          %178 = dma.done %s171, 1024
        $region32: #{tpu_custom_call.1} parent=27 // pred_fallthru
          _
        // Predicated region
        $region33: #{tpu_custom_call.1} parent=27 // pred_check
          %p179 = pneg %p81
        $region34: #{tpu_custom_call.1} parent=27 // pred_check_branch
          %181 = sbr.rel (%p179) target = $region36
        $region35: #{tpu_custom_call.1} parent=27 // pred_region
          %182 = dma.done [#allocation6], 1024
        $region36: #{tpu_custom_call.1} parent=27 // pred_fallthru
          _
        %s183 = sand.u32 %s42, 1
        %s184 = scalar_lea.sflag [#allocation3], %s183
        %s185 = sand.u32 %s42, 1
        %s186 = smul.addr %s185, 64
        %s187 = scalar_lea.vmem [#allocation2], %s186
        %p188 = pneg %p55
        %p189 = pneg %p52
        %p190 = pneg %p81
        %p191 = pneg %p78
        %p192 = pneg %p109
        %p193 = pneg %p106
        %s194 = sand.u32 %s96, 1
        %s195 = scalar_lea.sflag [#allocation4], %s194
        %s196 = sand.u32 %s96, 1
        %s197 = smul.addr %s196, 64
        %s198 = scalar_lea.vmem [#allocation7], %s197
        %s199 = smul.u32 16, %s24
        %s200 = smul.u32 16, %s24
        %s201 = smul.u32 16, %s24
        %v202 = vld [vmem:[%s174] sm:$0xff]
        %v203 = vld [vmem:[%s174 + $0x8] sm:$0xff]
        %v204 = vld [vmem:[%s174 + $0x10] sm:$0xff]
        %v205 = vld [vmem:[%s174 + $0x18] sm:$0xff]
        %v206 = vld [vmem:[%s174 + $0x20] sm:$0xff]
        %v207 = vld [vmem:[%s174 + $0x28] sm:$0xff]
        %v208 = vld [vmem:[%s174 + $0x30] sm:$0xff]
        %v209 = vld [vmem:[%s174 + $0x38] sm:$0xff]
        %v210 = vld [vmem:[#allocation5] sm:$0xff]
        %v211 = vld [vmem:[#allocation5 + $0x8] sm:$0xff]
        %v212 = vld [vmem:[#allocation5 + $0x10] sm:$0xff]
        %v213 = vld [vmem:[#allocation5 + $0x18] sm:$0xff]
        %v214 = vld [vmem:[#allocation5 + $0x20] sm:$0xff]
        %v215 = vld [vmem:[#allocation5 + $0x28] sm:$0xff]
        %v216 = vld [vmem:[#allocation5 + $0x30] sm:$0xff]
        %v217 = vld [vmem:[#allocation5 + $0x38] sm:$0xff]
        %v218 = vadd.f32 %v202, %v210
        %v219 = vadd.f32 %v203, %v211
        %v220 = vadd.f32 %v204, %v212
        %v221 = vadd.f32 %v205, %v213
        %v222 = vadd.f32 %v206, %v214
        %v223 = vadd.f32 %v207, %v215
        %v224 = vadd.f32 %v208, %v216
        %v225 = vadd.f32 %v209, %v217
        %226 = vst [vmem:[%s198] sm:$0xff] %v218
        %227 = vst [vmem:[%s198 + $0x8] sm:$0xff] %v219
        %228 = vst [vmem:[%s198 + $0x10] sm:$0xff] %v220
        %229 = vst [vmem:[%s198 + $0x18] sm:$0xff] %v221
        %230 = vst [vmem:[%s198 + $0x20] sm:$0xff] %v222
        %231 = vst [vmem:[%s198 + $0x28] sm:$0xff] %v223
        %232 = vst [vmem:[%s198 + $0x30] sm:$0xff] %v224
        %233 = vst [vmem:[%s198 + $0x38] sm:$0xff] %v225
        %s234 = sand.u32 %s96, 1
        %s235 = scalar_lea.sflag [#allocation4], %s234
        %s236 = sand.u32 %s96, 1
        %s237 = smul.addr %s236, 64
        %s238 = scalar_lea.vmem [#allocation7], %s237
        // Predicated region
        $region37: #{tpu_custom_call.1} parent=27 // pred_check
          %p239 = pneg %p106
        $region38: #{tpu_custom_call.1} parent=27 // pred_check_branch
          %241 = sbr.rel (%p239) target = $region40
        $region39: #{tpu_custom_call.1} parent=27 // pred_region
          %s242 = smul.u32 16, %s24
          %s244 = ssub.s32 1024, 1024
          %245 = vsyncadd %s235, %s244
          %s246 = smul.addr %s25, 16
          %s247 = sadd.s32 %s242, %s246
          %s248 = smul.addr %s247, 64
          %s249 = scalar_lea.hbm %s2, %s248
          %s251 = sshll.u32 %s238, 4
          %s252 = int_to_ptr.vmem [resolvable:$true] %s251
          %254 = dma.vmem_to_hbm [thread:$0]  %s252, 1024, %s249, %s235
        $region40: #{tpu_custom_call.1} parent=27 // pred_fallthru
          _
      $region28: #{tpu_custom_call.1} parent=5 // pred_fallthru
        _
      %p255 = scmp.le.s32.totalorder 2, %s15
      // Predicated region
      $region41: #{tpu_custom_call.1} parent=5 // pred_check
        %p256 = pneg %p255
      $region42: #{tpu_custom_call.1} parent=5 // pred_check_branch
        %258 = sbr.rel (%p256) target = $region44
      $region43: #{tpu_custom_call.1} parent=5 // pred_region
        %s259 = ssub.s32 %s15, 2
        // Predicated region
        $region45: #{tpu_custom_call.1} parent=43 // pred_check
          %p260 = pneg %p112
        $region46: #{tpu_custom_call.1} parent=43 // pred_check_branch
          %262 = sbr.rel (%p260) target = $region48
        $region47: #{tpu_custom_call.1} parent=43 // pred_region
          %s263 = sand.u32 %s97, 1
          %s264 = scalar_lea.sflag [#allocation4], %s263
          %s265 = sand.u32 %s97, 1
          %s266 = smul.addr %s265, 64
          %s267 = scalar_lea.vmem [#allocation7], %s266
          %268 = dma.done %s264, 1024
        $region48: #{tpu_custom_call.1} parent=43 // pred_fallthru
          _
      $region44: #{tpu_custom_call.1} parent=5 // pred_fallthru
        _
    $region6: #{tpu_custom_call.1} parent=1 // loop_footer
      %s19 = sadd.s32 1, %s15
    $region7: #{tpu_custom_call.1} parent=1 // loop_footer_branch
      %14 = sbr.rel target = $region3
    $region8: #{tpu_custom_call.1} parent=1 // loop_exit
      _
    %269 = vsyncpa [#allocation3], 1
    %s270 = scalar_lea.sflag [#allocation3], 1
    %271 = vsyncpa %s270, 1
    %272 = vsyncpa [#allocation6], 1
    %273 = vsyncpa [#allocation4], 1
    %s274 = scalar_lea.sflag [#allocation4], 1
    %275 = vsyncpa %s274, 1

</llo_original>
